<compile_context>
chip_gen: v7x
topology: tpu7x:2x2x1
jax: 0.10.0
libtpu: 0.0.40
codegen_flags: <defaults>
</compile_context>

<pallas_src>
import functools

import jax
import jax.numpy as jnp
from jax import lax
from jax.experimental import pallas as pl
from jax.experimental.pallas import tpu as pltpu

_MIB = 1024 * 1024
_LANE = 128
_SUB = 8


def _round_up(x, m):
    return -(-x // m) * m


def _vmem_capacity_bytes():
    """Physical VMEM capacity (best effort); conservative fallback = v7x (64 MiB)."""
    try:
        info = pltpu.get_tpu_info()
        for attr in ("vmem_capacity_bytes", "vmem_bytes"):
            cap = getattr(info, attr, None)
            if cap:
                return int(cap)
    except Exception:
        pass
    return 64 * _MIB


def _fintune_head_kernel(emb_ref, w_ref, b_ref, lab_ref,
                         logits_ref, nll_ref, acc_ref,
                         *, seq_len, tile_t, tile_b, num_real_b, num_labels):
    # emb_ref:    (tile_b, tile_t, D)   embeddings tile (native dtype, e.g. bf16)
    # w_ref:      (D, L_pad) bf16       fc weight, zero-padded columns (single-buffered)
    # b_ref:      (1, L_pad) f32        fc bias, zero-padded
    # lab_ref:    (tile_b, 1) int32     labels column
    # logits_ref: (tile_b, L_pad) f32   output logits (padded)
    # nll_ref:    (tile_b, 128) f32     per-row NLL broadcast across lanes (lane-dense)
    # acc_ref:    (tile_b, D) f32       pooled-sum accumulator (scratch)
    b_idx = pl.program_id(0)
    t_idx = pl.program_id(1)
    n_t = pl.num_programs(1)

    @pl.when(t_idx == 0)
    def _zero_acc():
        acc_ref[...] = jnp.zeros_like(acc_ref)

    emb = emb_ref[...].astype(jnp.float32)            # cast per tile, accumulate in f32

    if seq_len % tile_t == 0:
        acc_ref[...] += jnp.sum(emb, axis=1)
    else:
        @pl.when(t_idx < n_t - 1)
        def _full_tile():
            acc_ref[...] += jnp.sum(emb, axis=1)

        @pl.when(t_idx == n_t - 1)
        def _partial_tile():
            rem = seq_len % tile_t                    # static
            t_pos = lax.broadcasted_iota(jnp.int32, emb.shape, 1)
            acc_ref[...] += jnp.sum(jnp.where(t_pos < rem, emb, 0.0), axis=1)

    @pl.when(t_idx == n_t - 1)
    def _finalize():
        pooled = acc_ref[...]                                         # (tile_b, D) f32
        # bf16 x bf16 MXU path with f32 accumulation.
        logits = jnp.dot(pooled.astype(jnp.bfloat16), w_ref[...],
                         preferred_element_type=jnp.float32)
        logits = logits + b_ref[...]                                  # (tile_b, L_pad)
        logits_ref[...] = logits.astype(logits_ref.dtype)

        # Cross-entropy over the real label columns only.
        lane = lax.broadcasted_iota(jnp.int32, logits.shape, 1)
        masked = jnp.where(lane < num_labels, logits, jnp.float32(-1e30))
        m = jnp.max(masked, axis=-1, keepdims=True)                   # (tile_b, 1)
        lse = m + jnp.log(jnp.sum(jnp.exp(masked - m), axis=-1, keepdims=True))
        picked = jnp.sum(jnp.where(lane == lab_ref[...], logits, 0.0),
                         axis=-1, keepdims=True)                      # (tile_b, 1)
        nll = lse - picked

        # Zero padded batch rows so the wrapper's sum / B is the exact mean, then
        # broadcast across lanes for an unmasked lane-dense store.
        row = b_idx * tile_b + lax.broadcasted_iota(jnp.int32, nll.shape, 0)
        nll = jnp.where(row < num_real_b, nll, 0.0)
        nll_ref[...] = jnp.broadcast_to(nll, nll_ref.shape)


def fintune_forward(embeddings, labels, fc_weight, fc_bias):
    """embeddings: (B, T, D) float (bf16/f32) backbone output; labels: (B,) int;
       fc_weight: (num_labels, D) torch nn.Linear layout; fc_bias: (num_labels,)."""
    B, T, D = embeddings.shape
    L = int(fc_weight.shape[0])

    L_pad = _round_up(L, _LANE)                       # lane-dense logits / weight

    # Batch tile: fill the MXU rows (up to 128) for the finalize matmul, but keep at
    # least two batch tiles when possible so both v7x TensorCores get work.
    B_pad8 = _round_up(B, _SUB)
    tile_b = min(_LANE, B_pad8)
    if B_pad8 > _SUB and B_pad8 // tile_b < 2:
        tile_b = max(_SUB, _round_up(B_pad8 // 2, _SUB))
    B_pad = _round_up(B_pad8, tile_b)
    n_b = B_pad // tile_b

    itemsize = embeddings.dtype.itemsize

    # Generation-aware VMEM budget (embedding tile is double-buffered by BlockSpec).
    vmem_cap = _vmem_capacity_bytes()
    if vmem_cap >= 96 * _MIB:          # v5e / v6e: 128 MiB physical VMEM
        vmem_limit = 64 * _MIB
        per_buf_target = 24 * _MIB
    else:                              # v7x: 64 MiB physical VMEM — stay conservative
        vmem_limit = 48 * _MIB
        per_buf_target = 18 * _MIB

    fixed = (D * L_pad * 2             # bf16 weight (single-buffered)
             + L_pad * 4               # bias (single-buffered)
             + 2 * tile_b * 4          # labels column (double-buffered)
             + 2 * tile_b * L_pad * 4  # logits output blocks
             + 2 * tile_b * _LANE * 4  # nll output blocks
             + tile_b * D * 4)         # acc scratch
    per_buf = min(per_buf_target, max(_MIB, (vmem_limit - fixed - 2 * _MIB) // 2))
    max_tile_t = max(1, per_buf // (tile_b * D * itemsize))
    if max_tile_t >= T or T <= 16:
        tile_t = T
    else:
        tile_t = max(16, (min(max_tile_t, T) // 16) * 16)   # multiple of 16: bf16 packing
    n_t = pl.cdiv(T, tile_t)

    # TODO(synk): in a training loop, hoist/cache this padded-parameter prep (including
    # the (L, D) -> (D, L_pad) transpose) outside the per-step path.
    w = jnp.zeros((D, L_pad), jnp.bfloat16).at[:, :L].set(
        jnp.asarray(fc_weight, jnp.float32).T.astype(jnp.bfloat16))
    bias = jnp.zeros((1, L_pad), jnp.float32).at[0, :L].set(
        jnp.asarray(fc_bias, jnp.float32))
    lab = jnp.zeros((B_pad, 1), jnp.int32).at[:B, 0].set(
        jnp.asarray(labels, jnp.int32))

    emb = embeddings
    if B_pad != B:
        emb = jnp.pad(emb, ((0, B_pad - B), (0, 0), (0, 0)))

    kernel = functools.partial(
        _fintune_head_kernel,
        seq_len=T, tile_t=tile_t, tile_b=tile_b, num_real_b=B, num_labels=L)

    cost = pl.CostEstimate(
        flops=int(B_pad * T * D + 2 * B_pad * D * L_pad),
        transcendentals=int(B_pad * L_pad + B_pad),
        bytes_accessed=int(B_pad * T * D * itemsize           # embedding stream (dominant)
                           + D * L_pad * 2 + L_pad * 4        # bf16 weight + bias
                           + B_pad * 4                        # labels
                           + B_pad * L_pad * 4                # logits
                           + B_pad * _LANE * 4),              # nll
    )

    def build(single_buffer_params):
        # Constant-index weight/bias blocks don't need a second pipeline buffer.
        const_kw = ({"pipeline_mode": pl.Buffered(1)} if single_buffer_params else {})
        grid_spec = pltpu.PrefetchScalarGridSpec(
            num_scalar_prefetch=0,
            grid=(n_b, n_t),
            in_specs=[
                pl.BlockSpec((tile_b, tile_t, D), lambda b, t: (b, t, 0)),
                pl.BlockSpec((D, L_pad), lambda b, t: (0, 0), **const_kw),
                pl.BlockSpec((1, L_pad), lambda b, t: (0, 0), **const_kw),
                pl.BlockSpec((tile_b, 1), lambda b, t: (b, 0)),
            ],
            out_specs=(
                pl.BlockSpec((tile_b, L_pad), lambda b, t: (b, 0)),
                pl.BlockSpec((tile_b, _LANE), lambda b, t: (b, 0)),
            ),
            scratch_shapes=[pltpu.VMEM((tile_b, D), jnp.float32)],
        )
        return pl.pallas_call(
            kernel,
            grid_spec=grid_spec,
            out_shape=(
                jax.ShapeDtypeStruct((B_pad, L_pad), jnp.float32),
                jax.ShapeDtypeStruct((B_pad, _LANE), jnp.float32),
            ),
            compiler_params=pltpu.CompilerParams(
                dimension_semantics=("parallel", "arbitrary"),
                vmem_limit_bytes=vmem_limit,
            ),
            cost_estimate=cost,
        )

    try:
        logits_pad, nll_pad = build(True)(emb, w, bias, lab)
    except Exception:
        # Fallback: default double-buffering for the constant weight/bias blocks.
        logits_pad, nll_pad = build(False)(emb, w, bias, lab)

    logits = logits_pad[:B, :L]
    loss = jnp.sum(nll_pad[:, 0]) / B        # padded rows already zeroed in-kernel

    return {"loss": loss, "predictions": logits, "label_ids": labels}


if __name__ == "__main__":
    # Small shapes consistent with the module: target_length=3, num_labels=2,
    # config.dim = 16 -> embedding feature size D = 2*dim = 32, batch B = 2.
    B, T, dim, L = 2, 3, 16, 2
    D = 2 * dim

    key = jax.random.PRNGKey(0)
    k_emb, k_w, k_b, k_lab = jax.random.split(key, 4)

    # Synthetic backbone embeddings in bf16 (native backbone output dtype).
    embeddings = jax.random.normal(k_emb, (B, T, D), dtype=jnp.float32).astype(jnp.bfloat16)

    # Deterministic fc parameters (torch nn.Linear layout: weight (L, D), bias (L,)).
    fc_weight = jax.random.normal(k_w, (L, D), dtype=jnp.float32) * 0.05
    fc_bias = jax.random.normal(k_b, (L,), dtype=jnp.float32) * 0.05

    labels = jax.random.randint(k_lab, (B,), 0, L, dtype=jnp.int32)

    out = fintune_forward(embeddings, labels, fc_weight, fc_bias)
    jax.block_until_ready(out["loss"])
    jax.block_until_ready(out["predictions"])

    # Reference 1: same bf16-MXU path (pooled/weights bf16, f32 accumulation) — tight.
    emb_f32 = embeddings.astype(jnp.float32)
    pooled_ref = jnp.sum(emb_f32, axis=1)
    logits_bf = jnp.dot(pooled_ref.astype(jnp.bfloat16),
                        fc_weight.astype(jnp.bfloat16).T,
                        preferred_element_type=jnp.float32) + fc_bias
    lse_bf = jax.scipy.special.logsumexp(logits_bf, axis=-1)
    loss_bf = jnp.mean(lse_bf - logits_bf[jnp.arange(B), labels])
    assert jnp.allclose(out["predictions"], logits_bf, atol=2e-3, rtol=2e-3)
    assert jnp.allclose(out["loss"], loss_bf, atol=2e-3, rtol=2e-3)

    # Reference 2: full-f32 module semantics — looser tolerance for the bf16 weight cast.
    logits_ref = pooled_ref @ fc_weight.T + fc_bias
    lse = jax.scipy.special.logsumexp(logits_ref, axis=-1)
    loss_ref = jnp.mean(lse - logits_ref[jnp.arange(B), labels])
    assert jnp.allclose(out["predictions"], logits_ref, atol=2e-2, rtol=2e-2)
    assert jnp.allclose(out["loss"], loss_ref, atol=2e-2, rtol=2e-2)

    print("KERNEL_OK")
</pallas_src>

<mosaic_0001>
module attributes {stable_mosaic.version = 11 : i64} {
  func.func @_fintune_head_kernel(%arg0: i32, %arg1: i32, %arg2: memref<8x3x32xbf16, #tpu.memory_space<vmem>>, %arg3: memref<32x128xbf16, #tpu.memory_space<vmem>>, %arg4: memref<1x128xf32, #tpu.memory_space<vmem>>, %arg5: memref<8x1xi32, #tpu.memory_space<vmem>>, %arg6: memref<8x128xf32, #tpu.memory_space<vmem>>, %arg7: memref<8x128xf32, #tpu.memory_space<vmem>>, %arg8: memref<8x32xf32, #tpu.memory_space<vmem>>) attributes {dimension_semantics = [#tpu.dimension_semantics<parallel>, #tpu.dimension_semantics<arbitrary>], iteration_bounds = array<i64: 1, 1>, scalar_prefetch = 0 : i64, scratch_operands = 1 : i64, tpu.core_type = #tpu.core_type<tc>, window_params = [{transform_indices = @transform_0, window_bounds = array<i64: 8, 3, 32>}, {pipeline_mode = #tpu.pipeline_mode<synchronous>, transform_indices = @transform_1, window_bounds = array<i64: 32, 128>}, {pipeline_mode = #tpu.pipeline_mode<synchronous>, transform_indices = @transform_2, window_bounds = array<i64: 1, 128>}, {transform_indices = @transform_3, window_bounds = array<i64: 8, 1>}, {transform_indices = @transform_4, window_bounds = array<i64: 8, 128>}, {transform_indices = @transform_5, window_bounds = array<i64: 8, 128>}]} {
    %c0_i32 = arith.constant 0 : i32
    %0 = arith.cmpi eq, %arg1, %c0_i32 : i32
    %1 = arith.extui %0 : i1 to i32
    %c0_i32_0 = arith.constant 0 : i32
    %2 = arith.cmpi ne, %1, %c0_i32_0 : i32
    scf.if %2 {
      %cst_9 = arith.constant 0.000000e+00 : f32
      %12 = vector.broadcast %cst_9 : f32 to vector<8x32xf32>
      %c0_10 = arith.constant 0 : index
      %c0_11 = arith.constant 0 : index
      %13 = vector.load %arg8[%c0_10, %c0_11] : memref<8x32xf32, #tpu.memory_space<vmem>>, vector<8x32xf32>
      tpu.vector_store %arg8[%c0_10, %c0_11], %12 {strides = array<i32>} : memref<8x32xf32, #tpu.memory_space<vmem>>, vector<8x32xf32>,
    } else {
    }
    %c0 = arith.constant 0 : index
    %c0_1 = arith.constant 0 : index
    %c0_2 = arith.constant 0 : index
    %3 = vector.load %arg2[%c0, %c0_1, %c0_2] : memref<8x3x32xbf16, #tpu.memory_space<vmem>>, vector<8x3x32xbf16>
    %4 = arith.extf %3 : vector<8x3x32xbf16> to vector<8x3x32xf32>
    %c0_3 = arith.constant 0 : index
    %c0_4 = arith.constant 0 : index
    %5 = vector.load %arg8[%c0_3, %c0_4] : memref<8x32xf32, #tpu.memory_space<vmem>>, vector<8x32xf32>
    %cst = arith.constant dense<0.000000e+00> : vector<8x32xf32>
    %6 = vector.multi_reduction <add>, %4, %cst [1] : vector<8x3x32xf32> to vector<8x32xf32>
    %7 = arith.addf %5, %6 : vector<8x32xf32>
    %c0_5 = arith.constant 0 : index
    %c0_6 = arith.constant 0 : index
    %8 = vector.load %arg8[%c0_5, %c0_6] : memref<8x32xf32, #tpu.memory_space<vmem>>, vector<8x32xf32>
    tpu.vector_store %arg8[%c0_5, %c0_6], %7 {strides = array<i32>} : memref<8x32xf32, #tpu.memory_space<vmem>>, vector<8x32xf32>,
    %c0_i32_7 = arith.constant 0 : i32
    %9 = arith.cmpi eq, %arg1, %c0_i32_7 : i32
    %10 = arith.extui %9 : i1 to i32
    %c0_i32_8 = arith.constant 0 : i32
    %11 = arith.cmpi ne, %10, %c0_i32_8 : i32
    scf.if %11 {
      %c0_9 = arith.constant 0 : index
      %c0_10 = arith.constant 0 : index
      %12 = vector.load %arg8[%c0_9, %c0_10] : memref<8x32xf32, #tpu.memory_space<vmem>>, vector<8x32xf32>
      %13 = arith.truncf %12 : vector<8x32xf32> to vector<8x32xbf16>
      %c0_11 = arith.constant 0 : index
      %c0_12 = arith.constant 0 : index
      %14 = vector.load %arg3[%c0_11, %c0_12] : memref<32x128xbf16, #tpu.memory_space<vmem>>, vector<32x128xbf16>
      %cst_13 = arith.constant dense<0.000000e+00> : vector<8x128xf32>
      %15 = tpu.matmul %13, %14, %cst_13 {dimension_numbers = #tpu.dot_dimension_numbers<[1], [0], [0], [1], [0, 0, 1, 1], [], []>} : vector<8x32xbf16>, vector<32x128xbf16>, vector<8x128xf32> -> vector<8x128xf32>
      %c0_14 = arith.constant 0 : index
      %c0_15 = arith.constant 0 : index
      %16 = vector.load %arg4[%c0_14, %c0_15] : memref<1x128xf32, #tpu.memory_space<vmem>>, vector<1x128xf32>
      %17 = vector.broadcast %16 : vector<1x128xf32> to vector<8x128xf32>
      %18 = arith.addf %15, %17 : vector<8x128xf32>
      %c0_16 = arith.constant 0 : index
      %c0_17 = arith.constant 0 : index
      %19 = vector.load %arg6[%c0_16, %c0_17] : memref<8x128xf32, #tpu.memory_space<vmem>>, vector<8x128xf32>
      tpu.vector_store %arg6[%c0_16, %c0_17], %18 {strides = array<i32>} : memref<8x128xf32, #tpu.memory_space<vmem>>, vector<8x128xf32>,
      %20 = tpu.iota {dimensions = array<i32: 1>} : vector<8x128xi32>
      %c2_i32 = arith.constant 2 : i32
      %21 = vector.broadcast %c2_i32 : i32 to vector<8x128xi32>
      %22 = arith.cmpi slt, %20, %21 : vector<8x128xi32>
      %cst_18 = arith.constant -1.000000e+30 : f32
      %23 = vector.broadcast %cst_18 : f32 to vector<8x128xf32>
      %24 = arith.select %22, %18, %23 : vector<8x128xi1>, vector<8x128xf32>
      %cst_19 = arith.constant dense<0xFF800000> : vector<8xf32>
      %25 = vector.multi_reduction <maximumf>, %24, %cst_19 [1] : vector<8x128xf32> to vector<8xf32>
      %26 = vector.shape_cast %25 : vector<8xf32> to vector<8x1xf32>
      %27 = vector.broadcast %26 : vector<8x1xf32> to vector<8x128xf32>
      %28 = arith.subf %24, %27 : vector<8x128xf32>
      %29 = math.exp %28 : vector<8x128xf32>
      %cst_20 = arith.constant dense<0.000000e+00> : vector<8xf32>
      %30 = vector.multi_reduction <add>, %29, %cst_20 [1] : vector<8x128xf32> to vector<8xf32>
      %31 = vector.shape_cast %30 : vector<8xf32> to vector<8x1xf32>
      %32 = math.log %31 : vector<8x1xf32>
      %33 = arith.addf %26, %32 : vector<8x1xf32>
      %c0_21 = arith.constant 0 : index
      %c0_22 = arith.constant 0 : index
      %34 = vector.load %arg5[%c0_21, %c0_22] : memref<8x1xi32, #tpu.memory_space<vmem>>, vector<8x1xi32>
      %35 = vector.broadcast %34 : vector<8x1xi32> to vector<8x128xi32>
      %36 = arith.cmpi eq, %20, %35 : vector<8x128xi32>
      %cst_23 = arith.constant 0.000000e+00 : f32
      %37 = vector.broadcast %cst_23 : f32 to vector<8x128xf32>
      %38 = arith.select %36, %18, %37 : vector<8x128xi1>, vector<8x128xf32>
      %cst_24 = arith.constant dense<0.000000e+00> : vector<8xf32>
      %39 = vector.multi_reduction <add>, %38, %cst_24 [1] : vector<8x128xf32> to vector<8xf32>
      %40 = vector.shape_cast %39 : vector<8xf32> to vector<8x1xf32>
      %41 = arith.subf %33, %40 : vector<8x1xf32>
      %c8_i32 = arith.constant 8 : i32
      %42 = arith.muli %arg0, %c8_i32 : i32
      %43 = tpu.iota {dimensions = array<i32: 0>} : vector<8x1xi32>
      %44 = vector.broadcast %42 : i32 to vector<8x1xi32>
      %45 = arith.addi %44, %43 : vector<8x1xi32>
      %c2_i32_25 = arith.constant 2 : i32
      %46 = vector.broadcast %c2_i32_25 : i32 to vector<8x1xi32>
      %47 = arith.cmpi slt, %45, %46 : vector<8x1xi32>
      %cst_26 = arith.constant 0.000000e+00 : f32
      %48 = vector.broadcast %cst_26 : f32 to vector<8x1xf32>
      %49 = arith.select %47, %41, %48 : vector<8x1xi1>, vector<8x1xf32>
      %50 = vector.shape_cast %49 : vector<8x1xf32> to vector<8x1xf32>
      %51 = vector.broadcast %50 : vector<8x1xf32> to vector<8x128xf32>
      %c0_27 = arith.constant 0 : index
      %c0_28 = arith.constant 0 : index
      %52 = vector.load %arg7[%c0_27, %c0_28] : memref<8x128xf32, #tpu.memory_space<vmem>>, vector<8x128xf32>
      tpu.vector_store %arg7[%c0_27, %c0_28], %51 {strides = array<i32>} : memref<8x128xf32, #tpu.memory_space<vmem>>, vector<8x128xf32>,
    } else {
    }
    return
  }
  func.func @transform_0(%arg0: i32, %arg1: i32) -> (i32, i32, i32) {
    %c0_i32 = arith.constant 0 : i32
    %c0_i32_0 = arith.constant 0 : i32
    return %arg0, %arg1, %c0_i32 : i32, i32, i32
  }
  func.func @transform_1(%arg0: i32, %arg1: i32) -> (i32, i32) {
    %c0_i32 = arith.constant 0 : i32
    %c0_i32_0 = arith.constant 0 : i32
    %c0_i32_1 = arith.constant 0 : i32
    return %c0_i32, %c0_i32_0 : i32, i32
  }
  func.func @transform_2(%arg0: i32, %arg1: i32) -> (i32, i32) {
    %c0_i32 = arith.constant 0 : i32
    %c0_i32_0 = arith.constant 0 : i32
    %c0_i32_1 = arith.constant 0 : i32
    return %c0_i32, %c0_i32_0 : i32, i32
  }
  func.func @transform_3(%arg0: i32, %arg1: i32) -> (i32, i32) {
    %c0_i32 = arith.constant 0 : i32
    %c0_i32_0 = arith.constant 0 : i32
    return %arg0, %c0_i32 : i32, i32
  }
  func.func @transform_4(%arg0: i32, %arg1: i32) -> (i32, i32) {
    %c0_i32 = arith.constant 0 : i32
    %c0_i32_0 = arith.constant 0 : i32
    return %arg0, %c0_i32 : i32, i32
  }
  func.func @transform_5(%arg0: i32, %arg1: i32) -> (i32, i32) {
    %c0_i32 = arith.constant 0 : i32
    %c0_i32_0 = arith.constant 0 : i32
    return %arg0, %c0_i32 : i32, i32
  }
}

module attributes {stable_mosaic.version = 11 : i64} {
  func.func @_fintune_head_kernel(%arg0: i32, %arg1: i32, %arg2: memref<8x3x32xbf16, #tpu.memory_space<vmem>>, %arg3: memref<32x128xbf16, #tpu.memory_space<vmem>>, %arg4: memref<1x128xf32, #tpu.memory_space<vmem>>, %arg5: memref<8x1xi32, #tpu.memory_space<vmem>>, %arg6: memref<8x128xf32, #tpu.memory_space<vmem>>, %arg7: memref<8x128xf32, #tpu.memory_space<vmem>>, %arg8: memref<8x32xf32, #tpu.memory_space<vmem>>) attributes {dimension_semantics = [#tpu.dimension_semantics<parallel>, #tpu.dimension_semantics<arbitrary>], iteration_bounds = array<i64: 1, 1>, scalar_prefetch = 0 : i64, scratch_operands = 1 : i64, tpu.core_type = #tpu.core_type<tc>, window_params = [{transform_indices = @transform_0, window_bounds = array<i64: 8, 3, 32>}, {pipeline_mode = #tpu.pipeline_mode<synchronous>, transform_indices = @transform_1, window_bounds = array<i64: 32, 128>}, {pipeline_mode = #tpu.pipeline_mode<synchronous>, transform_indices = @transform_2, window_bounds = array<i64: 1, 128>}, {transform_indices = @transform_3, window_bounds = array<i64: 8, 1>}, {transform_indices = @transform_4, window_bounds = array<i64: 8, 128>}, {transform_indices = @transform_5, window_bounds = array<i64: 8, 128>}]} {
    %c0_i32 = arith.constant 0 : i32
    %0 = arith.cmpi eq, %arg1, %c0_i32 : i32
    %1 = arith.extui %0 : i1 to i32
    %c0_i32_0 = arith.constant 0 : i32
    %2 = arith.cmpi ne, %1, %c0_i32_0 : i32
    scf.if %2 {
      %cst_9 = arith.constant 0.000000e+00 : f32
      %12 = vector.broadcast %cst_9 : f32 to vector<8x32xf32>
      %c0_10 = arith.constant 0 : index
      %c0_11 = arith.constant 0 : index
      %13 = vector.load %arg8[%c0_10, %c0_11] : memref<8x32xf32, #tpu.memory_space<vmem>>, vector<8x32xf32>
      tpu.vector_store %arg8[%c0_10, %c0_11], %12 {strides = array<i32>} : memref<8x32xf32, #tpu.memory_space<vmem>>, vector<8x32xf32>,
    } else {
    }
    %c0 = arith.constant 0 : index
    %c0_1 = arith.constant 0 : index
    %c0_2 = arith.constant 0 : index
    %3 = vector.load %arg2[%c0, %c0_1, %c0_2] : memref<8x3x32xbf16, #tpu.memory_space<vmem>>, vector<8x3x32xbf16>
    %4 = arith.extf %3 : vector<8x3x32xbf16> to vector<8x3x32xf32>
    %c0_3 = arith.constant 0 : index
    %c0_4 = arith.constant 0 : index
    %5 = vector.load %arg8[%c0_3, %c0_4] : memref<8x32xf32, #tpu.memory_space<vmem>>, vector<8x32xf32>
    %cst = arith.constant dense<0.000000e+00> : vector<8x32xf32>
    %6 = vector.multi_reduction <add>, %4, %cst [1] : vector<8x3x32xf32> to vector<8x32xf32>
    %7 = arith.addf %5, %6 : vector<8x32xf32>
    %c0_5 = arith.constant 0 : index
    %c0_6 = arith.constant 0 : index
    %8 = vector.load %arg8[%c0_5, %c0_6] : memref<8x32xf32, #tpu.memory_space<vmem>>, vector<8x32xf32>
    tpu.vector_store %arg8[%c0_5, %c0_6], %7 {strides = array<i32>} : memref<8x32xf32, #tpu.memory_space<vmem>>, vector<8x32xf32>,
    %c0_i32_7 = arith.constant 0 : i32
    %9 = arith.cmpi eq, %arg1, %c0_i32_7 : i32
    %10 = arith.extui %9 : i1 to i32
    %c0_i32_8 = arith.constant 0 : i32
    %11 = arith.cmpi ne, %10, %c0_i32_8 : i32
    scf.if %11 {
      %c0_9 = arith.constant 0 : index
      %c0_10 = arith.constant 0 : index
      %12 = vector.load %arg8[%c0_9, %c0_10] : memref<8x32xf32, #tpu.memory_space<vmem>>, vector<8x32xf32>
      %13 = arith.truncf %12 : vector<8x32xf32> to vector<8x32xbf16>
      %c0_11 = arith.constant 0 : index
      %c0_12 = arith.constant 0 : index
      %14 = vector.load %arg3[%c0_11, %c0_12] : memref<32x128xbf16, #tpu.memory_space<vmem>>, vector<32x128xbf16>
      %cst_13 = arith.constant dense<0.000000e+00> : vector<8x128xf32>
      %15 = tpu.matmul %13, %14, %cst_13 {dimension_numbers = #tpu.dot_dimension_numbers<[1], [0], [0], [1], [0, 0, 1, 1], [], []>} : vector<8x32xbf16>, vector<32x128xbf16>, vector<8x128xf32> -> vector<8x128xf32>
      %c0_14 = arith.constant 0 : index
      %c0_15 = arith.constant 0 : index
      %16 = vector.load %arg4[%c0_14, %c0_15] : memref<1x128xf32, #tpu.memory_space<vmem>>, vector<1x128xf32>
      %17 = vector.broadcast %16 : vector<1x128xf32> to vector<8x128xf32>
      %18 = arith.addf %15, %17 : vector<8x128xf32>
      %c0_16 = arith.constant 0 : index
      %c0_17 = arith.constant 0 : index
      %19 = vector.load %arg6[%c0_16, %c0_17] : memref<8x128xf32, #tpu.memory_space<vmem>>, vector<8x128xf32>
      tpu.vector_store %arg6[%c0_16, %c0_17], %18 {strides = array<i32>} : memref<8x128xf32, #tpu.memory_space<vmem>>, vector<8x128xf32>,
      %20 = tpu.iota {dimensions = array<i32: 1>} : vector<8x128xi32>
      %c2_i32 = arith.constant 2 : i32
      %21 = vector.broadcast %c2_i32 : i32 to vector<8x128xi32>
      %22 = arith.cmpi slt, %20, %21 : vector<8x128xi32>
      %cst_18 = arith.constant -1.000000e+30 : f32
      %23 = vector.broadcast %cst_18 : f32 to vector<8x128xf32>
      %24 = arith.select %22, %18, %23 : vector<8x128xi1>, vector<8x128xf32>
      %cst_19 = arith.constant dense<0xFF800000> : vector<8xf32>
      %25 = vector.multi_reduction <maximumf>, %24, %cst_19 [1] : vector<8x128xf32> to vector<8xf32>
      %26 = vector.shape_cast %25 : vector<8xf32> to vector<8x1xf32>
      %27 = vector.broadcast %26 : vector<8x1xf32> to vector<8x128xf32>
      %28 = arith.subf %24, %27 : vector<8x128xf32>
      %29 = math.exp %28 : vector<8x128xf32>
      %cst_20 = arith.constant dense<0.000000e+00> : vector<8xf32>
      %30 = vector.multi_reduction <add>, %29, %cst_20 [1] : vector<8x128xf32> to vector<8xf32>
      %31 = vector.shape_cast %30 : vector<8xf32> to vector<8x1xf32>
      %32 = math.log %31 : vector<8x1xf32>
      %33 = arith.addf %26, %32 : vector<8x1xf32>
      %c0_21 = arith.constant 0 : index
      %c0_22 = arith.constant 0 : index
      %34 = vector.load %arg5[%c0_21, %c0_22] : memref<8x1xi32, #tpu.memory_space<vmem>>, vector<8x1xi32>
      %35 = vector.broadcast %34 : vector<8x1xi32> to vector<8x128xi32>
      %36 = arith.cmpi eq, %20, %35 : vector<8x128xi32>
      %cst_23 = arith.constant 0.000000e+00 : f32
      %37 = vector.broadcast %cst_23 : f32 to vector<8x128xf32>
      %38 = arith.select %36, %18, %37 : vector<8x128xi1>, vector<8x128xf32>
      %cst_24 = arith.constant dense<0.000000e+00> : vector<8xf32>
      %39 = vector.multi_reduction <add>, %38, %cst_24 [1] : vector<8x128xf32> to vector<8xf32>
      %40 = vector.shape_cast %39 : vector<8xf32> to vector<8x1xf32>
      %41 = arith.subf %33, %40 : vector<8x1xf32>
      %c8_i32 = arith.constant 8 : i32
      %42 = arith.muli %arg0, %c8_i32 : i32
      %43 = tpu.iota {dimensions = array<i32: 0>} : vector<8x1xi32>
      %44 = vector.broadcast %42 : i32 to vector<8x1xi32>
      %45 = arith.addi %44, %43 : vector<8x1xi32>
      %c2_i32_25 = arith.constant 2 : i32
      %46 = vector.broadcast %c2_i32_25 : i32 to vector<8x1xi32>
      %47 = arith.cmpi slt, %45, %46 : vector<8x1xi32>
      %cst_26 = arith.constant 0.000000e+00 : f32
      %48 = vector.broadcast %cst_26 : f32 to vector<8x1xf32>
      %49 = arith.select %47, %41, %48 : vector<8x1xi1>, vector<8x1xf32>
      %50 = vector.shape_cast %49 : vector<8x1xf32> to vector<8x1xf32>
      %51 = vector.broadcast %50 : vector<8x1xf32> to vector<8x128xf32>
      %c0_27 = arith.constant 0 : index
      %c0_28 = arith.constant 0 : index
      %52 = vector.load %arg7[%c0_27, %c0_28] : memref<8x128xf32, #tpu.memory_space<vmem>>, vector<8x128xf32>
      tpu.vector_store %arg7[%c0_27, %c0_28], %51 {strides = array<i32>} : memref<8x128xf32, #tpu.memory_space<vmem>>, vector<8x128xf32>,
    } else {
    }
    return
  }
  func.func @transform_0(%arg0: i32, %arg1: i32) -> (i32, i32, i32) {
    %c0_i32 = arith.constant 0 : i32
    %c0_i32_0 = arith.constant 0 : i32
    return %arg0, %arg1, %c0_i32 : i32, i32, i32
  }
  func.func @transform_1(%arg0: i32, %arg1: i32) -> (i32, i32) {
    %c0_i32 = arith.constant 0 : i32
    %c0_i32_0 = arith.constant 0 : i32
    %c0_i32_1 = arith.constant 0 : i32
    return %c0_i32, %c0_i32_0 : i32, i32
  }
  func.func @transform_2(%arg0: i32, %arg1: i32) -> (i32, i32) {
    %c0_i32 = arith.constant 0 : i32
    %c0_i32_0 = arith.constant 0 : i32
    %c0_i32_1 = arith.constant 0 : i32
    return %c0_i32, %c0_i32_0 : i32, i32
  }
  func.func @transform_3(%arg0: i32, %arg1: i32) -> (i32, i32) {
    %c0_i32 = arith.constant 0 : i32
    %c0_i32_0 = arith.constant 0 : i32
    return %arg0, %c0_i32 : i32, i32
  }
  func.func @transform_4(%arg0: i32, %arg1: i32) -> (i32, i32) {
    %c0_i32 = arith.constant 0 : i32
    %c0_i32_0 = arith.constant 0 : i32
    return %arg0, %c0_i32 : i32, i32
  }
  func.func @transform_5(%arg0: i32, %arg1: i32) -> (i32, i32) {
    %c0_i32 = arith.constant 0 : i32
    %c0_i32_0 = arith.constant 0 : i32
    return %arg0, %c0_i32 : i32, i32
  }
}

</mosaic_0001>

<llo_original>
// kernel: tpu_custom_call.1
$region0: #{tpu_custom_call.1}
  #allocation0 [shape = 'u32[]', space=smem, size = 0x4, offset = 0x4, fixed_abs, tag = 'smem constant byte address 0x4 - core index']
  #allocation1 [shape = 'u32[144,128]{1,0:T(1,128)}', space=vmem, size = 0x12000, scoped, tag = 'internal scratch']
  #allocation2 [shape = 'f32[8,32]{1,0:T(8,128)}', space=vmem, size = 0x1000, scoped, tag = 'scratch operand']
  %s0 = inlined_call_operand.vmem [shape: bf16[8,3,32], index: 0, kind: input, shape index: {}]
  %s1 = inlined_call_operand.vmem [shape: bf16[32,128], index: 1, kind: input, shape index: {}]
  %s2 = inlined_call_operand.vmem [shape: f32[1,128], index: 2, kind: input, shape index: {}]
  %s3 = inlined_call_operand.vmem [shape: s32[8,1], index: 3, kind: input, shape index: {}]
  %s4 = inlined_call_operand.hbm [shape: f32[8,128], index: 4, kind: output, shape index: {0}]
  %s5 = inlined_call_operand.hbm [shape: f32[8,128], index: 5, kind: output, shape index: {1}]
  %6 = xla_tuple %s4, %s5
  %s7 = sld [smem:[#allocation0]]
  $region42: #{tpu_custom_call.1} parent=0
    _
  %s9 = ssub.s32 1, %s7
  %s10 = scalar_select 0, %s9, %s7
  $region1: #{tpu_custom_call.1} parent=0
    #allocation3 [shape = 'u8[4096]{0}', space=vmem, size = 0x1000, scoped, tag = 'output window, operand 0, single buffered']
    #allocation4 [shape = 's32[1]{0}', space=sflag, size = 0x4, scoped, tag = 'scoped memory for tpu_custom_call.1']
    #allocation5 [shape = 'u8[4096]{0}', space=vmem, size = 0x1000, scoped, tag = 'output window, operand 1, single buffered']
    #allocation6 [shape = 's32[1]{0}', space=sflag, size = 0x4, scoped, tag = 'scoped memory for tpu_custom_call.1']
    %11 = vsyncpa [#allocation4], 0
    %12 = vsyncpa [#allocation6], 0
    // Predicated region
    $region2: #{tpu_custom_call.1} parent=1 // pred_check
      _
    $region3: #{tpu_custom_call.1} parent=1 // pred_check_branch
      %14 = sbr.rel (0) target = $region5
    $region4: #{tpu_custom_call.1} parent=1 // pred_region
      _
    $region5: #{tpu_custom_call.1} parent=1 // pred_fallthru
      _
    // Predicated region
    $region6: #{tpu_custom_call.1} parent=1 // pred_check
      _
    $region7: #{tpu_custom_call.1} parent=1 // pred_check_branch
      %16 = sbr.rel (0) target = $region9
    $region8: #{tpu_custom_call.1} parent=1 // pred_region
      _
    $region9: #{tpu_custom_call.1} parent=1 // pred_fallthru
      _
    // Predicated region
    $region10: #{tpu_custom_call.1} parent=1 // pred_check
      _
    $region11: #{tpu_custom_call.1} parent=1 // pred_check_branch
      %18 = sbr.rel (0) target = $region13
    $region12: #{tpu_custom_call.1} parent=1 // pred_region
      _
    $region13: #{tpu_custom_call.1} parent=1 // pred_fallthru
      _
    // Predicated region
    $region14: #{tpu_custom_call.1} parent=1 // pred_check
      _
    $region15: #{tpu_custom_call.1} parent=1 // pred_check_branch
      %20 = sbr.rel (0) target = $region17
    $region16: #{tpu_custom_call.1} parent=1 // pred_region
      _
    $region17: #{tpu_custom_call.1} parent=1 // pred_fallthru
      _
    %p22 = scmp.eq.s32.totalorder 0, 0
    // Predicated region
    $region18: #{tpu_custom_call.1} parent=1 // pred_check
      %p23 = pneg %p22
    $region19: #{tpu_custom_call.1} parent=1 // pred_check_branch
      %25 = sbr.rel (%p23) target = $region21
    $region20: #{tpu_custom_call.1} parent=1 // pred_region
      %vm26 = vcmask 261120
      %27 = vst.msk [vmem:[#allocation2] sm:$0xff] %vm26, 0.0
    $region21: #{tpu_custom_call.1} parent=1 // pred_fallthru
      _
    %v28 = vld [vmem:[%s0] sm:$0x3]
    %v29 = vld [vmem:[%s0 + $0x2] sm:$0x3]
    %v30 = vld [vmem:[%s0 + $0x4] sm:$0x3]
    %v31 = vld [vmem:[%s0 + $0x6] sm:$0x3]
    %v32 = vld [vmem:[%s0 + $0x8] sm:$0x3]
    %v33 = vld [vmem:[%s0 + $0xa] sm:$0x3]
    %v34 = vld [vmem:[%s0 + $0xc] sm:$0x3]
    %v35 = vld [vmem:[%s0 + $0xe] sm:$0x3]
    %v36 = vunpack.c.l.bf16 %v28
    %v37 = vunpack.c.l.bf16 %v29
    %v38 = vunpack.c.l.bf16 %v30
    %v39 = vunpack.c.l.bf16 %v31
    %v40 = vunpack.c.l.bf16 %v32
    %v41 = vunpack.c.l.bf16 %v33
    %v42 = vunpack.c.l.bf16 %v34
    %v43 = vunpack.c.l.bf16 %v35
    %v44 = vld [vmem:[#allocation2] sm:$0xff]
    %vm45 = vcmask 256000
    %v46 = vsel %vm45, %v36, 0.0
    %v47 = vrot.slane %v46, 4
    %v48 = vadd.f32 %v46, %v47
    %v49 = vrot.slane %v48, 2
    %v50 = vadd.f32 %v48, %v49
    %v51 = vrot.slane %v50, 1
    %v52 = vadd.f32 %v50, %v51
    %v53 = vsel %vm45, %v37, 0.0
    %v54 = vrot.slane %v53, 4
    %v55 = vadd.f32 %v53, %v54
    %v56 = vrot.slane %v55, 2
    %v57 = vadd.f32 %v55, %v56
    %v58 = vrot.slane %v57, 1
    %v59 = vadd.f32 %v57, %v58
    %v60 = vsel %vm45, %v38, 0.0
    %v61 = vrot.slane %v60, 4
    %v62 = vadd.f32 %v60, %v61
    %v63 = vrot.slane %v62, 2
    %v64 = vadd.f32 %v62, %v63
    %v65 = vrot.slane %v64, 1
    %v66 = vadd.f32 %v64, %v65
    %v67 = vsel %vm45, %v39, 0.0
    %v68 = vrot.slane %v67, 4
    %v69 = vadd.f32 %v67, %v68
    %v70 = vrot.slane %v69, 2
    %v71 = vadd.f32 %v69, %v70
    %v72 = vrot.slane %v71, 1
    %v73 = vadd.f32 %v71, %v72
    %v74 = vsel %vm45, %v40, 0.0
    %v75 = vrot.slane %v74, 4
    %v76 = vadd.f32 %v74, %v75
    %v77 = vrot.slane %v76, 2
    %v78 = vadd.f32 %v76, %v77
    %v79 = vrot.slane %v78, 1
    %v80 = vadd.f32 %v78, %v79
    %v81 = vsel %vm45, %v41, 0.0
    %v82 = vrot.slane %v81, 4
    %v83 = vadd.f32 %v81, %v82
    %v84 = vrot.slane %v83, 2
    %v85 = vadd.f32 %v83, %v84
    %v86 = vrot.slane %v85, 1
    %v87 = vadd.f32 %v85, %v86
    %v88 = vsel %vm45, %v42, 0.0
    %v89 = vrot.slane %v88, 4
    %v90 = vadd.f32 %v88, %v89
    %v91 = vrot.slane %v90, 2
    %v92 = vadd.f32 %v90, %v91
    %v93 = vrot.slane %v92, 1
    %v94 = vadd.f32 %v92, %v93
    %v95 = vsel %vm45, %v43, 0.0
    %v96 = vrot.slane %v95, 4
    %v97 = vadd.f32 %v95, %v96
    %v98 = vrot.slane %v97, 2
    %v99 = vadd.f32 %v97, %v98
    %v100 = vrot.slane %v99, 1
    %v101 = vadd.f32 %v99, %v100
    %vm110 = vcmask 1041409
    %v111 = vsel %vm110, %v59, %v52
    %vm112 = vcmask 1042434
    %v113 = vsel %vm112, %v66, %v111
    %vm114 = vcmask 1043459
    %v115 = vsel %vm114, %v73, %v113
    %vm116 = vcmask 1044484
    %v117 = vsel %vm116, %v80, %v115
    %vm118 = vcmask 1045509
    %v119 = vsel %vm118, %v87, %v117
    %vm120 = vcmask 1046534
    %v121 = vsel %vm120, %v94, %v119
    %vm122 = vcmask 1047559
    %v123 = vsel %vm122, %v101, %v121
    %v125 = vadd.f32 %v44, %v123
    %vm126 = vcmask 261120
    %127 = vst.msk [vmem:[#allocation2] sm:$0xff] %vm126, %v125
    // Predicated region
    $region22: #{tpu_custom_call.1} parent=1 // pred_check
      %p128 = pneg %p22
    $region23: #{tpu_custom_call.1} parent=1 // pred_check_branch
      %130 = sbr.rel (%p128) target = $region25
    $region24: #{tpu_custom_call.1} parent=1 // pred_region
      %v131 = vld [vmem:[#allocation2] sm:$0xff]
      %v132 = vpack.c.bf16 %v131, %v131
      %v133 = vld [vmem:[%s1] sm:$0xf]
      %v134 = vld [vmem:[%s1 + $0x4] sm:$0xf]
      %v135 = vld [vmem:[%s1 + $0x8] sm:$0xf]
      %v136 = vld [vmem:[%s1 + $0xc] sm:$0xf]
      %v137 = vld [vmem:[%s2] sm:$0x1]
      %v139 = vlaneseq
      %v140 = vshrl.u32 %v139, 7
      %v141 = vsub.s32 0, %v140
      %v142 = vrot.slane %v137, %v141
      %v148 = vunpack.c.l.b16 %v133
      %v149 = vunpack.c.l.b16 %v134
      %v150 = vunpack.c.l.b16 %v135
      %v151 = vunpack.c.l.b16 %v136
      %v152 = vpack.c.b16 %v149, %v148
      %v153 = vpack.c.b16 %v151, %v150
      %v157 = vsel %vm126, %v132, 0
      %159 = vmatprep.subr.bf16.mxu0 0
      %160 = vmatpush1.bf16.msra.mxu0 %v152
      %161 = vmatprep.subr.bf16.mxu0 0
      %162 = vmatpush1.bf16.msra.mxu0 %v153
      %163 = vmatprep.subr.bf16.mxu0 0
      %164 = vmatpush1.bf16.msra.mxu0 0
      %165 = vmatprep.subr.bf16.mxu0 0
      %166 = vmatpush1.bf16.msra.mxu0 0
      %167 = vmatprep.subr.bf16.mxu0 0
      %168 = vmatpush1.bf16.msra.mxu0 0
      %169 = vmatprep.subr.bf16.mxu0 0
      %170 = vmatpush1.bf16.msra.mxu0 0
      %171 = vmatprep.subr.bf16.mxu0 0
      %172 = vmatpush1.bf16.msra.mxu0 0
      %173 = vmatprep.subr.bf16.mxu0 0
      %174 = vmatpush1.bf16.msra.mxu0 0
      %175 = vmatprep.subr.bf16.mxu0 0
      %176 = vmatpush1.bf16.msra.mxu0 0
      %177 = vmatprep.subr.bf16.mxu0 0
      %178 = vmatpush1.bf16.msra.mxu0 0
      %179 = vmatprep.subr.bf16.mxu0 0
      %180 = vmatpush1.bf16.msra.mxu0 0
      %181 = vmatprep.subr.bf16.mxu0 0
      %182 = vmatpush1.bf16.msra.mxu0 0
      %183 = vmatprep.subr.bf16.mxu0 0
      %184 = vmatpush1.bf16.msra.mxu0 0
      %185 = vmatprep.subr.bf16.mxu0 0
      %186 = vmatpush1.bf16.msra.mxu0 0
      %187 = vmatprep.subr.bf16.mxu0 0
      %188 = vmatpush1.bf16.msra.mxu0 0
      %189 = vmatprep.subr.bf16.mxu0 0
      %190 = vmatpush1.bf16.msra.mxu0 0
      %191 = vmatprep.mubr.bf16.mxu0 0
      %192 = vmatmul.mubr.bf16.gmra.mrb[0].mxu0 %v157
      %v193 = vpop.f32.mrb[0].mxu0
      %v194 = vadd.f32 %v142, %v193
      %v195 = vpop.f32.mrb[0].mxu0
      %v196 = vpop.f32.mrb[0].mxu0
      %v197 = vpop.f32.mrb[0].mxu0
      %198 = vdwg.mxu0
      %199 = vst [vmem:[#allocation3] sm:$0xff] %v194
      %v200 = vlaneseq
      %v201 = vand.u32 %v200, 127
      %vm202 = vcmp.lt.s32.totalorder %v201, 2
      %v203 = vsel %vm202, %v194, -1e+30
      %204 = vmax.xlane.f32.xlu0 %v203
      %v205 = vpop.xlane.xlu0 %204
      %v206 = vsub.f32 %v203, %v205
      %v207 = vmul.f32 %v206, 1.442695
      %v208 = vpow.pop %v207
      %209 = vadd.xlane.f32.xlu0 %v208
      %v210 = vpop.xlane.xlu0 %209
      %v211 = vlog2.pop %v210
      %v212 = vmul.f32 %v211, 0.6931472
      %v213 = vadd.f32 %v205, %v212
      %v214 = vld [vmem:[%s3] sm:$0xff]
      %215 = vset.pattern.permute.xlu0 0
      %216 = vperm.xlu0 %215, %v214
      %v217 = vpop.permute.xlu0 %216
      %vm218 = vcmp.eq.s32.totalorder %v201, %v217
      %v219 = vsel %vm218, %v194, 0.0
      %220 = vadd.xlane.f32.xlu0 %v219
      %v221 = vpop.xlane.xlu0 %220
      %v222 = vsub.f32 %v213, %v221
      %s223 = smul.u32 0, 8
      %v224 = vlaneseq
      %v225 = vshrl.u32 %v224, 7
      %v226 = vstv %s223
      %v227 = vadd.s32 %v226, %v225
      %vm228 = vcmp.lt.s32.totalorder %v227, 2
      %v229 = vsel %vm228, %v222, 0.0
      %230 = vst [vmem:[#allocation5] sm:$0xff] %v229
    $region25: #{tpu_custom_call.1} parent=1 // pred_fallthru
      _
    // Predicated region
    $region26: #{tpu_custom_call.1} parent=1 // pred_check
      _
    $region27: #{tpu_custom_call.1} parent=1 // pred_check_branch
      %232 = sbr.rel (0) target = $region29
    $region28: #{tpu_custom_call.1} parent=1 // pred_region
      %s234 = ssub.s32 128, 128
      %235 = vsyncadd [#allocation4], %s234
      %s237 = sshll.u32 [#allocation3], 4
      %s238 = int_to_ptr.vmem [resolvable:$true] %s237
      %240 = dma.vmem_to_hbm [thread:$0]  %s238, 128, %s4, [#allocation4]
    $region29: #{tpu_custom_call.1} parent=1 // pred_fallthru
      _
    // Predicated region
    $region30: #{tpu_custom_call.1} parent=1 // pred_check
      _
    $region31: #{tpu_custom_call.1} parent=1 // pred_check_branch
      %242 = sbr.rel (0) target = $region33
    $region32: #{tpu_custom_call.1} parent=1 // pred_region
      %s244 = ssub.s32 128, 128
      %245 = vsyncadd [#allocation6], %s244
      %s247 = sshll.u32 [#allocation5], 4
      %s248 = int_to_ptr.vmem [resolvable:$true] %s247
      %250 = dma.vmem_to_hbm [thread:$0]  %s248, 128, %s5, [#allocation6]
    $region33: #{tpu_custom_call.1} parent=1 // pred_fallthru
      _
    // Predicated region
    $region34: #{tpu_custom_call.1} parent=1 // pred_check
      _
    $region35: #{tpu_custom_call.1} parent=1 // pred_check_branch
      %252 = sbr.rel (0) target = $region37
    $region36: #{tpu_custom_call.1} parent=1 // pred_region
      %253 = dma.done [#allocation4], 128
    $region37: #{tpu_custom_call.1} parent=1 // pred_fallthru
      _
    // Predicated region
    $region38: #{tpu_custom_call.1} parent=1 // pred_check
      _
    $region39: #{tpu_custom_call.1} parent=1 // pred_check_branch
      %255 = sbr.rel (0) target = $region41
    $region40: #{tpu_custom_call.1} parent=1 // pred_region
      %256 = dma.done [#allocation6], 128
    $region41: #{tpu_custom_call.1} parent=1 // pred_fallthru
      _
    %257 = vsyncpa [#allocation4], 1
    %258 = vsyncpa [#allocation6], 1

// kernel: tpu_custom_call.1
$region0: #{tpu_custom_call.1}
  #allocation0 [shape = 'u32[]', space=smem, size = 0x4, offset = 0x4, fixed_abs, tag = 'smem constant byte address 0x4 - core index']
  #allocation1 [shape = 'u32[144,128]{1,0:T(1,128)}', space=vmem, size = 0x12000, scoped, tag = 'internal scratch']
  #allocation2 [shape = 'f32[8,32]{1,0:T(8,128)}', space=vmem, size = 0x1000, scoped, tag = 'scratch operand']
  %s0 = inlined_call_operand.vmem [shape: bf16[8,3,32], index: 0, kind: input, shape index: {}]
  %s1 = inlined_call_operand.vmem [shape: bf16[32,128], index: 1, kind: input, shape index: {}]
  %s2 = inlined_call_operand.vmem [shape: f32[1,128], index: 2, kind: input, shape index: {}]
  %s3 = inlined_call_operand.vmem [shape: s32[8,1], index: 3, kind: input, shape index: {}]
  %s4 = inlined_call_operand.hbm [shape: f32[8,128], index: 4, kind: output, shape index: {0}]
  %s5 = inlined_call_operand.hbm [shape: f32[8,128], index: 5, kind: output, shape index: {1}]
  %6 = xla_tuple %s4, %s5
  %s7 = sld [smem:[#allocation0]]
  $region42: #{tpu_custom_call.1} parent=0
    _
  %s9 = ssub.s32 1, %s7
  %s10 = scalar_select 0, %s9, %s7
  $region1: #{tpu_custom_call.1} parent=0
    #allocation3 [shape = 'u8[4096]{0}', space=vmem, size = 0x1000, scoped, tag = 'output window, operand 0, single buffered']
    #allocation4 [shape = 's32[1]{0}', space=sflag, size = 0x4, scoped, tag = 'scoped memory for tpu_custom_call.1']
    #allocation5 [shape = 'u8[4096]{0}', space=vmem, size = 0x1000, scoped, tag = 'output window, operand 1, single buffered']
    #allocation6 [shape = 's32[1]{0}', space=sflag, size = 0x4, scoped, tag = 'scoped memory for tpu_custom_call.1']
    %11 = vsyncpa [#allocation4], 0
    %12 = vsyncpa [#allocation6], 0
    // Predicated region
    $region2: #{tpu_custom_call.1} parent=1 // pred_check
      _
    $region3: #{tpu_custom_call.1} parent=1 // pred_check_branch
      %14 = sbr.rel (0) target = $region5
    $region4: #{tpu_custom_call.1} parent=1 // pred_region
      _
    $region5: #{tpu_custom_call.1} parent=1 // pred_fallthru
      _
    // Predicated region
    $region6: #{tpu_custom_call.1} parent=1 // pred_check
      _
    $region7: #{tpu_custom_call.1} parent=1 // pred_check_branch
      %16 = sbr.rel (0) target = $region9
    $region8: #{tpu_custom_call.1} parent=1 // pred_region
      _
    $region9: #{tpu_custom_call.1} parent=1 // pred_fallthru
      _
    // Predicated region
    $region10: #{tpu_custom_call.1} parent=1 // pred_check
      _
    $region11: #{tpu_custom_call.1} parent=1 // pred_check_branch
      %18 = sbr.rel (0) target = $region13
    $region12: #{tpu_custom_call.1} parent=1 // pred_region
      _
    $region13: #{tpu_custom_call.1} parent=1 // pred_fallthru
      _
    // Predicated region
    $region14: #{tpu_custom_call.1} parent=1 // pred_check
      _
    $region15: #{tpu_custom_call.1} parent=1 // pred_check_branch
      %20 = sbr.rel (0) target = $region17
    $region16: #{tpu_custom_call.1} parent=1 // pred_region
      _
    $region17: #{tpu_custom_call.1} parent=1 // pred_fallthru
      _
    %p22 = scmp.eq.s32.totalorder 0, 0
    // Predicated region
    $region18: #{tpu_custom_call.1} parent=1 // pred_check
      %p23 = pneg %p22
    $region19: #{tpu_custom_call.1} parent=1 // pred_check_branch
      %25 = sbr.rel (%p23) target = $region21
    $region20: #{tpu_custom_call.1} parent=1 // pred_region
      %vm26 = vcmask 261120
      %27 = vst.msk [vmem:[#allocation2] sm:$0xff] %vm26, 0.0
    $region21: #{tpu_custom_call.1} parent=1 // pred_fallthru
      _
    %v28 = vld [vmem:[%s0] sm:$0x3]
    %v29 = vld [vmem:[%s0 + $0x2] sm:$0x3]
    %v30 = vld [vmem:[%s0 + $0x4] sm:$0x3]
    %v31 = vld [vmem:[%s0 + $0x6] sm:$0x3]
    %v32 = vld [vmem:[%s0 + $0x8] sm:$0x3]
    %v33 = vld [vmem:[%s0 + $0xa] sm:$0x3]
    %v34 = vld [vmem:[%s0 + $0xc] sm:$0x3]
    %v35 = vld [vmem:[%s0 + $0xe] sm:$0x3]
    %v36 = vunpack.c.l.bf16 %v28
    %v37 = vunpack.c.l.bf16 %v29
    %v38 = vunpack.c.l.bf16 %v30
    %v39 = vunpack.c.l.bf16 %v31
    %v40 = vunpack.c.l.bf16 %v32
    %v41 = vunpack.c.l.bf16 %v33
    %v42 = vunpack.c.l.bf16 %v34
    %v43 = vunpack.c.l.bf16 %v35
    %v44 = vld [vmem:[#allocation2] sm:$0xff]
    %vm45 = vcmask 256000
    %v46 = vsel %vm45, %v36, 0.0
    %v47 = vrot.slane %v46, 4
    %v48 = vadd.f32 %v46, %v47
    %v49 = vrot.slane %v48, 2
    %v50 = vadd.f32 %v48, %v49
    %v51 = vrot.slane %v50, 1
    %v52 = vadd.f32 %v50, %v51
    %v53 = vsel %vm45, %v37, 0.0
    %v54 = vrot.slane %v53, 4
    %v55 = vadd.f32 %v53, %v54
    %v56 = vrot.slane %v55, 2
    %v57 = vadd.f32 %v55, %v56
    %v58 = vrot.slane %v57, 1
    %v59 = vadd.f32 %v57, %v58
    %v60 = vsel %vm45, %v38, 0.0
    %v61 = vrot.slane %v60, 4
    %v62 = vadd.f32 %v60, %v61
    %v63 = vrot.slane %v62, 2
    %v64 = vadd.f32 %v62, %v63
    %v65 = vrot.slane %v64, 1
    %v66 = vadd.f32 %v64, %v65
    %v67 = vsel %vm45, %v39, 0.0
    %v68 = vrot.slane %v67, 4
    %v69 = vadd.f32 %v67, %v68
    %v70 = vrot.slane %v69, 2
    %v71 = vadd.f32 %v69, %v70
    %v72 = vrot.slane %v71, 1
    %v73 = vadd.f32 %v71, %v72
    %v74 = vsel %vm45, %v40, 0.0
    %v75 = vrot.slane %v74, 4
    %v76 = vadd.f32 %v74, %v75
    %v77 = vrot.slane %v76, 2
    %v78 = vadd.f32 %v76, %v77
    %v79 = vrot.slane %v78, 1
    %v80 = vadd.f32 %v78, %v79
    %v81 = vsel %vm45, %v41, 0.0
    %v82 = vrot.slane %v81, 4
    %v83 = vadd.f32 %v81, %v82
    %v84 = vrot.slane %v83, 2
    %v85 = vadd.f32 %v83, %v84
    %v86 = vrot.slane %v85, 1
    %v87 = vadd.f32 %v85, %v86
    %v88 = vsel %vm45, %v42, 0.0
    %v89 = vrot.slane %v88, 4
    %v90 = vadd.f32 %v88, %v89
    %v91 = vrot.slane %v90, 2
    %v92 = vadd.f32 %v90, %v91
    %v93 = vrot.slane %v92, 1
    %v94 = vadd.f32 %v92, %v93
    %v95 = vsel %vm45, %v43, 0.0
    %v96 = vrot.slane %v95, 4
    %v97 = vadd.f32 %v95, %v96
    %v98 = vrot.slane %v97, 2
    %v99 = vadd.f32 %v97, %v98
    %v100 = vrot.slane %v99, 1
    %v101 = vadd.f32 %v99, %v100
    %vm110 = vcmask 1041409
    %v111 = vsel %vm110, %v59, %v52
    %vm112 = vcmask 1042434
    %v113 = vsel %vm112, %v66, %v111
    %vm114 = vcmask 1043459
    %v115 = vsel %vm114, %v73, %v113
    %vm116 = vcmask 1044484
    %v117 = vsel %vm116, %v80, %v115
    %vm118 = vcmask 1045509
    %v119 = vsel %vm118, %v87, %v117
    %vm120 = vcmask 1046534
    %v121 = vsel %vm120, %v94, %v119
    %vm122 = vcmask 1047559
    %v123 = vsel %vm122, %v101, %v121
    %v125 = vadd.f32 %v44, %v123
    %vm126 = vcmask 261120
    %127 = vst.msk [vmem:[#allocation2] sm:$0xff] %vm126, %v125
    // Predicated region
    $region22: #{tpu_custom_call.1} parent=1 // pred_check
      %p128 = pneg %p22
    $region23: #{tpu_custom_call.1} parent=1 // pred_check_branch
      %130 = sbr.rel (%p128) target = $region25
    $region24: #{tpu_custom_call.1} parent=1 // pred_region
      %v131 = vld [vmem:[#allocation2] sm:$0xff]
      %v132 = vpack.c.bf16 %v131, %v131
      %v133 = vld [vmem:[%s1] sm:$0xf]
      %v134 = vld [vmem:[%s1 + $0x4] sm:$0xf]
      %v135 = vld [vmem:[%s1 + $0x8] sm:$0xf]
      %v136 = vld [vmem:[%s1 + $0xc] sm:$0xf]
      %v137 = vld [vmem:[%s2] sm:$0x1]
      %v139 = vlaneseq
      %v140 = vshrl.u32 %v139, 7
      %v141 = vsub.s32 0, %v140
      %v142 = vrot.slane %v137, %v141
      %v148 = vunpack.c.l.b16 %v133
      %v149 = vunpack.c.l.b16 %v134
      %v150 = vunpack.c.l.b16 %v135
      %v151 = vunpack.c.l.b16 %v136
      %v152 = vpack.c.b16 %v149, %v148
      %v153 = vpack.c.b16 %v151, %v150
      %v157 = vsel %vm126, %v132, 0
      %159 = vmatprep.subr.bf16.mxu0 0
      %160 = vmatpush1.bf16.msra.mxu0 %v152
      %161 = vmatprep.subr.bf16.mxu0 0
      %162 = vmatpush1.bf16.msra.mxu0 %v153
      %163 = vmatprep.subr.bf16.mxu0 0
      %164 = vmatpush1.bf16.msra.mxu0 0
      %165 = vmatprep.subr.bf16.mxu0 0
      %166 = vmatpush1.bf16.msra.mxu0 0
      %167 = vmatprep.subr.bf16.mxu0 0
      %168 = vmatpush1.bf16.msra.mxu0 0
      %169 = vmatprep.subr.bf16.mxu0 0
      %170 = vmatpush1.bf16.msra.mxu0 0
      %171 = vmatprep.subr.bf16.mxu0 0
      %172 = vmatpush1.bf16.msra.mxu0 0
      %173 = vmatprep.subr.bf16.mxu0 0
      %174 = vmatpush1.bf16.msra.mxu0 0
      %175 = vmatprep.subr.bf16.mxu0 0
      %176 = vmatpush1.bf16.msra.mxu0 0
      %177 = vmatprep.subr.bf16.mxu0 0
      %178 = vmatpush1.bf16.msra.mxu0 0
      %179 = vmatprep.subr.bf16.mxu0 0
      %180 = vmatpush1.bf16.msra.mxu0 0
      %181 = vmatprep.subr.bf16.mxu0 0
      %182 = vmatpush1.bf16.msra.mxu0 0
      %183 = vmatprep.subr.bf16.mxu0 0
      %184 = vmatpush1.bf16.msra.mxu0 0
      %185 = vmatprep.subr.bf16.mxu0 0
      %186 = vmatpush1.bf16.msra.mxu0 0
      %187 = vmatprep.subr.bf16.mxu0 0
      %188 = vmatpush1.bf16.msra.mxu0 0
      %189 = vmatprep.subr.bf16.mxu0 0
      %190 = vmatpush1.bf16.msra.mxu0 0
      %191 = vmatprep.mubr.bf16.mxu0 0
      %192 = vmatmul.mubr.bf16.gmra.mrb[0].mxu0 %v157
      %v193 = vpop.f32.mrb[0].mxu0
      %v194 = vadd.f32 %v142, %v193
      %v195 = vpop.f32.mrb[0].mxu0
      %v196 = vpop.f32.mrb[0].mxu0
      %v197 = vpop.f32.mrb[0].mxu0
      %198 = vdwg.mxu0
      %199 = vst [vmem:[#allocation3] sm:$0xff] %v194
      %v200 = vlaneseq
      %v201 = vand.u32 %v200, 127
      %vm202 = vcmp.lt.s32.totalorder %v201, 2
      %v203 = vsel %vm202, %v194, -1e+30
      %204 = vmax.xlane.f32.xlu0 %v203
      %v205 = vpop.xlane.xlu0 %204
      %v206 = vsub.f32 %v203, %v205
      %v207 = vmul.f32 %v206, 1.442695
      %v208 = vpow.pop %v207
      %209 = vadd.xlane.f32.xlu0 %v208
      %v210 = vpop.xlane.xlu0 %209
      %v211 = vlog2.pop %v210
      %v212 = vmul.f32 %v211, 0.6931472
      %v213 = vadd.f32 %v205, %v212
      %v214 = vld [vmem:[%s3] sm:$0xff]
      %215 = vset.pattern.permute.xlu0 0
      %216 = vperm.xlu0 %215, %v214
      %v217 = vpop.permute.xlu0 %216
      %vm218 = vcmp.eq.s32.totalorder %v201, %v217
      %v219 = vsel %vm218, %v194, 0.0
      %220 = vadd.xlane.f32.xlu0 %v219
      %v221 = vpop.xlane.xlu0 %220
      %v222 = vsub.f32 %v213, %v221
      %s223 = smul.u32 0, 8
      %v224 = vlaneseq
      %v225 = vshrl.u32 %v224, 7
      %v226 = vstv %s223
      %v227 = vadd.s32 %v226, %v225
      %vm228 = vcmp.lt.s32.totalorder %v227, 2
      %v229 = vsel %vm228, %v222, 0.0
      %230 = vst [vmem:[#allocation5] sm:$0xff] %v229
    $region25: #{tpu_custom_call.1} parent=1 // pred_fallthru
      _
    // Predicated region
    $region26: #{tpu_custom_call.1} parent=1 // pred_check
      _
    $region27: #{tpu_custom_call.1} parent=1 // pred_check_branch
      %232 = sbr.rel (0) target = $region29
    $region28: #{tpu_custom_call.1} parent=1 // pred_region
      %s234 = ssub.s32 128, 128
      %235 = vsyncadd [#allocation4], %s234
      %s237 = sshll.u32 [#allocation3], 4
      %s238 = int_to_ptr.vmem [resolvable:$true] %s237
      %240 = dma.vmem_to_hbm [thread:$0]  %s238, 128, %s4, [#allocation4]
    $region29: #{tpu_custom_call.1} parent=1 // pred_fallthru
      _
    // Predicated region
    $region30: #{tpu_custom_call.1} parent=1 // pred_check
      _
    $region31: #{tpu_custom_call.1} parent=1 // pred_check_branch
      %242 = sbr.rel (0) target = $region33
    $region32: #{tpu_custom_call.1} parent=1 // pred_region
      %s244 = ssub.s32 128, 128
      %245 = vsyncadd [#allocation6], %s244
      %s247 = sshll.u32 [#allocation5], 4
      %s248 = int_to_ptr.vmem [resolvable:$true] %s247
      %250 = dma.vmem_to_hbm [thread:$0]  %s248, 128, %s5, [#allocation6]
    $region33: #{tpu_custom_call.1} parent=1 // pred_fallthru
      _
    // Predicated region
    $region34: #{tpu_custom_call.1} parent=1 // pred_check
      _
    $region35: #{tpu_custom_call.1} parent=1 // pred_check_branch
      %252 = sbr.rel (0) target = $region37
    $region36: #{tpu_custom_call.1} parent=1 // pred_region
      %253 = dma.done [#allocation4], 128
    $region37: #{tpu_custom_call.1} parent=1 // pred_fallthru
      _
    // Predicated region
    $region38: #{tpu_custom_call.1} parent=1 // pred_check
      _
    $region39: #{tpu_custom_call.1} parent=1 // pred_check_branch
      %255 = sbr.rel (0) target = $region41
    $region40: #{tpu_custom_call.1} parent=1 // pred_region
      %256 = dma.done [#allocation6], 128
    $region41: #{tpu_custom_call.1} parent=1 // pred_fallthru
      _
    %257 = vsyncpa [#allocation4], 1
    %258 = vsyncpa [#allocation6], 1

</llo_original>
